<compile_context>
chip_gen: v6e
topology: v6e:2x2x1
jax: 0.10.0
libtpu: 0.0.40
codegen_flags: <defaults>
</compile_context>

<pallas_src>
import numpy as np
import jax
import jax.numpy as jnp
from jax import lax
from jax.experimental import pallas as pl
from jax.experimental.pallas import tpu as pltpu


def _round_up(x, m):
    return ((x + m - 1) // m) * m


# ----------------------------- Pallas kernel ------------------------------- #

def _make_fractal_kernel(H, W, cin0, cout, num_blocks, nbi, ck, p_pad):
    """Whole-network kernel for one chunk of `nbi` images (grid runs over chunks)."""
    Wp = W + 2
    Lq = (H - 1) * Wp + W                          # columns covered by shifted views
    OFF = tuple(kh * Wp + kw for kh in range(3) for kw in range(3))
    k_max = 9 * ck

    def kernel(x_ref, w_ref, b_ref, o_ref, act_ref, col_ref):
        # Zero both persistent scratches at every step (scratch VMEM is per-core and
        # uninitialized): the act halo columns are the implicit zero padding of every
        # block after the first, and zero col rows make the zero-padded K positions of
        # block 0 contribute exactly 0 (avoids NaN * 0 pollution from stale data).
        act_ref[...] = jnp.zeros_like(act_ref)
        col_ref[...] = jnp.zeros_like(col_ref)

        # Valid (non side-pad) output columns: q = h*Wp + w is real iff w < W.
        q = lax.broadcasted_iota(jnp.int32, (1, Lq), 1)
        interior = (q % Wp) < W

        for i in range(num_blocks):                           # static unroll
            cin_i = cin0 if i == 0 else cout
            w_i = w_ref[i]                                    # (cout, 9*ck)  bf16
            b_i = b_ref[i]                                    # (cout, 1)     f32

            # ---- in-VMEM im2col: 9 shifted views stacked along K, all images of
            #      this step folded along the lane axis (stride p_pad per image).
            #      Issued back-to-back so the XLU shifts sit ahead of the matmul.
            for n in range(nbi):
                for k in range(9):
                    if i == 0:
                        view = x_ref[n, :, pl.ds(OFF[k], Lq)]
                    else:
                        view = act_ref[:, pl.ds(n * p_pad + OFF[k], Lq)]
                    col_ref[pl.ds(k * ck, cin_i), pl.ds(n * p_pad, Lq)] = (
                        view.astype(col_ref.dtype))

            # ---- ONE MXU matmul per block: (cout, 9*ck) @ (9*ck, nbi*p_pad) -> f32
            res = jnp.dot(w_i, col_ref[...].astype(jnp.bfloat16),
                          preferred_element_type=jnp.float32)

            for n in range(nbi):
                r = res[:, n * p_pad:n * p_pad + Lq] + b_i    # f32 bias add
                if i == num_blocks - 1:
                    # Compact padded-row layout -> dense (cout, H*W): lane-dense,
                    # unpadded output store (no un-pad slice pass in the wrapper).
                    rows = [r[:, h * Wp:h * Wp + W] for h in range(H)]
                    o_ref[n, :, :] = jnp.concatenate(rows, axis=-1).astype(o_ref.dtype)
                else:
                    # Zero the side-pad columns and re-embed at offset Wp+1 so the
                    # activation scratch is exactly the zero-padded next-block input.
                    r = jnp.where(interior, r, 0.0)
                    act_ref[:, pl.ds(n * p_pad + Wp + 1, Lq)] = r.astype(act_ref.dtype)

    return kernel


# ------------------------------ JAX wrapper --------------------------------- #

def _prepare_packed_weights(params, cin0, cout, ck):
    """Collapse fractal leaves (exact), fold the final 1x1 conv into the last block
    (exact), then pack everything into ONE bf16 weight slab and ONE f32 bias slab
    laid out for a single (cout, 9*ck) @ (9*ck, N) matmul per block."""
    blocks = [(jnp.sum(w, axis=0), jnp.sum(b, axis=0)) for (w, b) in params["blocks"]]
    wf, bf = params["final_w"], params["final_b"]             # (C,C) [in,out], (C,)
    w_last, b_last = blocks[-1]
    blocks[-1] = (jnp.einsum("hwic,cd->hwid", w_last, wf), b_last @ wf + bf)

    w_slabs, b_slabs = [], []
    for (w_sum, b_sum) in blocks:
        cin_i = w_sum.shape[2]
        # (3,3,cin,cout) -> (cout, 9, cin), k = kh*3 + kw   (matches OFF ordering)
        w9 = jnp.transpose(w_sum, (3, 0, 1, 2)).reshape(cout, 9, cin_i)
        w9 = jnp.pad(w9, ((0, 0), (0, 0), (0, ck - cin_i)))  # zero-pad K to common CK
        w_slabs.append(w9.reshape(cout, 9 * ck))
        b_slabs.append(b_sum.reshape(cout, 1))
    w_pack = jnp.stack(w_slabs).astype(jnp.bfloat16)          # (nb, cout, 9*ck)
    b_pack = jnp.stack(b_slabs).astype(jnp.float32)           # (nb, cout, 1)
    return w_pack, b_pack


def fractal_network_forward(x_nchw, params):
    N, Cin, H, W = x_nchw.shape
    Cout = params["final_b"].shape[0]
    nb = len(params["blocks"])
    Wp, Hp = W + 2, H + 2
    P = Hp * Wp
    HW = H * W
    P_pad = _round_up(P, 128)                    # lane-dense activation slab
    CK = max(Cin, Cout)
    K_max = 9 * CK

    # Two grid steps so both v7x TensorCores get work; v5e/v6e only pay 2 tiny
    # per-step overheads.  Images of a step are folded along the lane axis.
    G = 2 if N >= 2 else 1
    NBI = -(-N // G)
    N_pad = G * NBI

    # One spatial pad (SAME 3x3), stay in NCHW, flatten padded spatial, lane-pad, bf16.
    xp = jnp.pad(x_nchw, ((0, N_pad - N), (0, 0), (1, 1), (1, 1)))
    xp = xp.reshape(N_pad, Cin, P)
    xp = jnp.pad(xp, ((0, 0), (0, 0), (0, P_pad - P))).astype(jnp.bfloat16)

    w_pack, b_pack = _prepare_packed_weights(params, Cin, Cout, CK)
    kernel = _make_fractal_kernel(H, W, Cin, Cout, nb, NBI, CK, P_pad)

    flops, cin_i = 0, Cin
    for _ in range(nb):
        flops += 2 * 9 * cin_i * Cout * H * W * N
        cin_i = Cout
    bytes_accessed = (int(xp.size) * 2 + N_pad * Cout * HW * 4
                      + int(w_pack.size) * 2 + int(b_pack.size) * 4)

    # Per-step VMEM: input tile + output tile + packed weights + act/col scratch
    # ~= 150 KiB here -> far below the scoped limit on v5e/v6e/v7x.  For large
    # H*W, row-tile with a 1-row halo and set vmem_limit_bytes against v7x's 64 MiB.
    out = pl.pallas_call(
        kernel,
        out_shape=jax.ShapeDtypeStruct((N_pad, Cout, HW), jnp.float32),
        grid_spec=pltpu.PrefetchScalarGridSpec(
            num_scalar_prefetch=0,
            grid=(G,),
            in_specs=[
                pl.BlockSpec((NBI, Cin, P_pad), lambda g: (g, 0, 0)),
                pl.BlockSpec((nb, Cout, K_max), lambda g: (0, 0, 0)),
                pl.BlockSpec((nb, Cout, 1), lambda g: (0, 0, 0)),
            ],
            out_specs=pl.BlockSpec((NBI, Cout, HW), lambda g: (g, 0, 0)),
            scratch_shapes=[
                pltpu.VMEM((Cout, NBI * P_pad), jnp.bfloat16),   # zero-halo activations
                pltpu.VMEM((K_max, NBI * P_pad), jnp.float32),   # in-VMEM im2col
            ],
        ),
        compiler_params=pltpu.CompilerParams(
            dimension_semantics=("parallel",)),                  # v7x 2-TC split
        cost_estimate=pl.CostEstimate(flops=flops, transcendentals=0,
                                      bytes_accessed=bytes_accessed),
    )(xp, w_pack, b_pack)

    # Output is already unpadded and contiguous: (N, Cout, H*W) -> (N, Cout, H, W).
    return out[:N].reshape(N, Cout, H, W)


# --------------------------- parameter construction ------------------------- #

def init_fractal_network(key, in_channels, out_channels, num_blocks, block_depth):
    """Deterministic synthetic parameters (shapes match the PyTorch module)."""
    n_leaves = 2 ** (block_depth - 1)                # leaves of each FractalBlock
    params = {"blocks": []}
    for i in range(num_blocks):
        cin = in_channels if i == 0 else out_channels
        key, kw_, kb_ = jax.random.split(key, 3)
        w = jax.random.normal(kw_, (n_leaves, 3, 3, cin, out_channels), jnp.float32) * 0.1
        b = jax.random.normal(kb_, (n_leaves, out_channels), jnp.float32) * 0.1
        params["blocks"].append((w, b))
    key, kw_, kb_ = jax.random.split(key, 3)
    params["final_w"] = jax.random.normal(kw_, (out_channels, out_channels), jnp.float32) * 0.1
    params["final_b"] = jax.random.normal(kb_, (out_channels,), jnp.float32) * 0.1
    return params


# ----------------------- pure-JAX reference (for checking) ----------------- #

def reference_forward(x_nchw, params):
    x = x_nchw
    for (w_stack, b_stack) in params["blocks"]:
        acc = 0.0
        for l in range(w_stack.shape[0]):
            acc = acc + lax.conv_general_dilated(
                x, w_stack[l], window_strides=(1, 1), padding="SAME",
                dimension_numbers=("NCHW", "HWIO", "NCHW"),
            ) + b_stack[l][None, :, None, None]
        x = acc
    out = jnp.einsum("nchw,cd->ndhw", x, params["final_w"])
    return out + params["final_b"][None, :, None, None]


# --------------------------------- main ------------------------------------ #

if __name__ == "__main__":
    in_channels, out_channels, num_blocks, block_depth = 4, 8, 2, 3

    key = jax.random.PRNGKey(0)
    kx, kp = jax.random.split(key)
    x = jax.random.normal(kx, (2, in_channels, 16, 16), jnp.float32)   # NCHW, like PyTorch
    params = init_fractal_network(kp, in_channels, out_channels, num_blocks, block_depth)

    out = jax.jit(fractal_network_forward)(x, params)
    out = jax.block_until_ready(out)

    assert out.shape == (2, out_channels, 16, 16), out.shape
    ref = reference_forward(x, params)
    # bf16 activations/weights into the MXU (f32 accumulation) -> 1e-2 tolerance.
    np.testing.assert_allclose(np.asarray(out), np.asarray(ref), rtol=1e-2, atol=1e-2)

    print("KERNEL_OK")
</pallas_src>

<mosaic_0001>
module attributes {stable_mosaic.version = 11 : i64} {
  func.func @kernel(%arg0: i32, %arg1: memref<1x4x384xbf16, #tpu.memory_space<vmem>>, %arg2: memref<2x8x72xbf16, #tpu.memory_space<vmem>>, %arg3: memref<2x8x1xf32, #tpu.memory_space<vmem>>, %arg4: memref<1x8x256xf32, #tpu.memory_space<vmem>>, %arg5: memref<8x384xbf16, #tpu.memory_space<vmem>>, %arg6: memref<72x384xf32, #tpu.memory_space<vmem>>) attributes {dimension_semantics = [#tpu.dimension_semantics<parallel>], iteration_bounds = array<i64: 2>, scalar_prefetch = 0 : i64, scratch_operands = 2 : i64, tpu.core_type = #tpu.core_type<tc>, window_params = [{transform_indices = @transform_0, window_bounds = array<i64: 1, 4, 384>}, {pipeline_mode = #tpu.pipeline_mode<synchronous>, transform_indices = @transform_1, window_bounds = array<i64: 2, 8, 72>}, {pipeline_mode = #tpu.pipeline_mode<synchronous>, transform_indices = @transform_2, window_bounds = array<i64: 2, 8, 1>}, {transform_indices = @transform_3, window_bounds = array<i64: 1, 8, 256>}]} {
    %cst = arith.constant 0.000000e+00 : bf16
    %0 = vector.broadcast %cst : bf16 to vector<8x384xbf16>
    %c0 = arith.constant 0 : index
    %c0_0 = arith.constant 0 : index
    %1 = vector.load %arg5[%c0, %c0_0] : memref<8x384xbf16, #tpu.memory_space<vmem>>, vector<8x384xbf16>
    tpu.vector_store %arg5[%c0, %c0_0], %0 {strides = array<i32>} : memref<8x384xbf16, #tpu.memory_space<vmem>>, vector<8x384xbf16>,
    %cst_1 = arith.constant 0.000000e+00 : f32
    %2 = vector.broadcast %cst_1 : f32 to vector<72x384xf32>
    %c0_2 = arith.constant 0 : index
    %c0_3 = arith.constant 0 : index
    %3 = vector.load %arg6[%c0_2, %c0_3] : memref<72x384xf32, #tpu.memory_space<vmem>>, vector<72x384xf32>
    tpu.vector_store %arg6[%c0_2, %c0_3], %2 {strides = array<i32>} : memref<72x384xf32, #tpu.memory_space<vmem>>, vector<72x384xf32>,
    %4 = tpu.iota {dimensions = array<i32: 1>} : vector<1x286xi32>
    %c18_i32 = arith.constant 18 : i32
    %c0_i32 = arith.constant 0 : i32
    %5 = arith.cmpi eq, %c18_i32, %c0_i32 : i32
    %c1_i32 = arith.constant 1 : i32
    %6 = arith.select %5, %c1_i32, %c18_i32 : i32
    %7 = vector.broadcast %6 : i32 to vector<1x286xi32>
    %8 = arith.remsi %4, %7 : vector<1x286xi32>
    %c0_i32_4 = arith.constant 0 : i32
    %9 = vector.broadcast %c0_i32_4 : i32 to vector<1x286xi32>
    %10 = arith.cmpi ne, %8, %9 : vector<1x286xi32>
    %c0_i32_5 = arith.constant 0 : i32
    %11 = vector.broadcast %c0_i32_5 : i32 to vector<1x286xi32>
    %12 = arith.cmpi slt, %8, %11 : vector<1x286xi32>
    %c0_i32_6 = arith.constant 0 : i32
    %13 = arith.cmpi slt, %6, %c0_i32_6 : i32
    %14 = vector.broadcast %13 : i1 to vector<1x286xi1>
    %15 = vector.broadcast %14 : vector<1x286xi1> to vector<1x286xi1>
    %16 = arith.xori %12, %15 : vector<1x286xi1>
    %17 = arith.andi %16, %10 : vector<1x286xi1>
    %18 = vector.broadcast %6 : i32 to vector<1x286xi32>
    %19 = arith.addi %8, %18 : vector<1x286xi32>
    %20 = arith.select %17, %19, %8 : vector<1x286xi1>, vector<1x286xi32>
    %c16_i32 = arith.constant 16 : i32
    %21 = vector.broadcast %c16_i32 : i32 to vector<1x286xi32>
    %22 = arith.cmpi slt, %20, %21 : vector<1x286xi32>
    %c0_7 = arith.constant 0 : index
    %c0_8 = arith.constant 0 : index
    %c0_9 = arith.constant 0 : index
    %23 = vector.load %arg2[%c0_7, %c0_8, %c0_9] : memref<2x8x72xbf16, #tpu.memory_space<vmem>>, vector<1x8x72xbf16>
    %24 = vector.shape_cast %23 : vector<1x8x72xbf16> to vector<8x72xbf16>
    %c0_10 = arith.constant 0 : index
    %c0_11 = arith.constant 0 : index
    %c0_12 = arith.constant 0 : index
    %25 = vector.load %arg3[%c0_10, %c0_11, %c0_12] : memref<2x8x1xf32, #tpu.memory_space<vmem>>, vector<1x8x1xf32>
    %26 = vector.shape_cast %25 : vector<1x8x1xf32> to vector<8x1xf32>
    %c0_13 = arith.constant 0 : index
    %c0_14 = arith.constant 0 : index
    %c0_15 = arith.constant 0 : index
    %27 = vector.load %arg1[%c0_13, %c0_14, %c0_15] : memref<1x4x384xbf16, #tpu.memory_space<vmem>>, vector<1x4x286xbf16>
    %28 = vector.shape_cast %27 : vector<1x4x286xbf16> to vector<4x286xbf16>
    %29 = arith.extf %28 : vector<4x286xbf16> to vector<4x286xf32>
    %c0_16 = arith.constant 0 : index
    %c0_17 = arith.constant 0 : index
    %30 = vector.load %arg6[%c0_16, %c0_17] : memref<72x384xf32, #tpu.memory_space<vmem>>, vector<4x286xf32>
    tpu.vector_store %arg6[%c0_16, %c0_17], %29 {strides = array<i32>} : memref<72x384xf32, #tpu.memory_space<vmem>>, vector<4x286xf32>,
    %c0_18 = arith.constant 0 : index
    %c0_19 = arith.constant 0 : index
    %c1 = arith.constant 1 : index
    %31 = vector.load %arg1[%c0_18, %c0_19, %c1] : memref<1x4x384xbf16, #tpu.memory_space<vmem>>, vector<1x4x286xbf16>
    %32 = vector.shape_cast %31 : vector<1x4x286xbf16> to vector<4x286xbf16>
    %33 = arith.extf %32 : vector<4x286xbf16> to vector<4x286xf32>
    %c8 = arith.constant 8 : index
    %c0_20 = arith.constant 0 : index
    %34 = vector.load %arg6[%c8, %c0_20] : memref<72x384xf32, #tpu.memory_space<vmem>>, vector<4x286xf32>
    tpu.vector_store %arg6[%c8, %c0_20], %33 {strides = array<i32>} : memref<72x384xf32, #tpu.memory_space<vmem>>, vector<4x286xf32>,
    %c0_21 = arith.constant 0 : index
    %c0_22 = arith.constant 0 : index
    %c2 = arith.constant 2 : index
    %35 = vector.load %arg1[%c0_21, %c0_22, %c2] : memref<1x4x384xbf16, #tpu.memory_space<vmem>>, vector<1x4x286xbf16>
    %36 = vector.shape_cast %35 : vector<1x4x286xbf16> to vector<4x286xbf16>
    %37 = arith.extf %36 : vector<4x286xbf16> to vector<4x286xf32>
    %c16 = arith.constant 16 : index
    %c0_23 = arith.constant 0 : index
    %38 = vector.load %arg6[%c16, %c0_23] : memref<72x384xf32, #tpu.memory_space<vmem>>, vector<4x286xf32>
    tpu.vector_store %arg6[%c16, %c0_23], %37 {strides = array<i32>} : memref<72x384xf32, #tpu.memory_space<vmem>>, vector<4x286xf32>,
    %c0_24 = arith.constant 0 : index
    %c0_25 = arith.constant 0 : index
    %c18 = arith.constant 18 : index
    %39 = vector.load %arg1[%c0_24, %c0_25, %c18] : memref<1x4x384xbf16, #tpu.memory_space<vmem>>, vector<1x4x286xbf16>
    %40 = vector.shape_cast %39 : vector<1x4x286xbf16> to vector<4x286xbf16>
    %41 = arith.extf %40 : vector<4x286xbf16> to vector<4x286xf32>
    %c24 = arith.constant 24 : index
    %c0_26 = arith.constant 0 : index
    %42 = vector.load %arg6[%c24, %c0_26] : memref<72x384xf32, #tpu.memory_space<vmem>>, vector<4x286xf32>
    tpu.vector_store %arg6[%c24, %c0_26], %41 {strides = array<i32>} : memref<72x384xf32, #tpu.memory_space<vmem>>, vector<4x286xf32>,
    %c0_27 = arith.constant 0 : index
    %c0_28 = arith.constant 0 : index
    %c19 = arith.constant 19 : index
    %43 = vector.load %arg1[%c0_27, %c0_28, %c19] : memref<1x4x384xbf16, #tpu.memory_space<vmem>>, vector<1x4x286xbf16>
    %44 = vector.shape_cast %43 : vector<1x4x286xbf16> to vector<4x286xbf16>
    %45 = arith.extf %44 : vector<4x286xbf16> to vector<4x286xf32>
    %c32 = arith.constant 32 : index
    %c0_29 = arith.constant 0 : index
    %46 = vector.load %arg6[%c32, %c0_29] : memref<72x384xf32, #tpu.memory_space<vmem>>, vector<4x286xf32>
    tpu.vector_store %arg6[%c32, %c0_29], %45 {strides = array<i32>} : memref<72x384xf32, #tpu.memory_space<vmem>>, vector<4x286xf32>,
    %c0_30 = arith.constant 0 : index
    %c0_31 = arith.constant 0 : index
    %c20 = arith.constant 20 : index
    %47 = vector.load %arg1[%c0_30, %c0_31, %c20] : memref<1x4x384xbf16, #tpu.memory_space<vmem>>, vector<1x4x286xbf16>
    %48 = vector.shape_cast %47 : vector<1x4x286xbf16> to vector<4x286xbf16>
    %49 = arith.extf %48 : vector<4x286xbf16> to vector<4x286xf32>
    %c40 = arith.constant 40 : index
    %c0_32 = arith.constant 0 : index
    %50 = vector.load %arg6[%c40, %c0_32] : memref<72x384xf32, #tpu.memory_space<vmem>>, vector<4x286xf32>
    tpu.vector_store %arg6[%c40, %c0_32], %49 {strides = array<i32>} : memref<72x384xf32, #tpu.memory_space<vmem>>, vector<4x286xf32>,
    %c0_33 = arith.constant 0 : index
    %c0_34 = arith.constant 0 : index
    %c36 = arith.constant 36 : index
    %51 = vector.load %arg1[%c0_33, %c0_34, %c36] : memref<1x4x384xbf16, #tpu.memory_space<vmem>>, vector<1x4x286xbf16>
    %52 = vector.shape_cast %51 : vector<1x4x286xbf16> to vector<4x286xbf16>
    %53 = arith.extf %52 : vector<4x286xbf16> to vector<4x286xf32>
    %c48 = arith.constant 48 : index
    %c0_35 = arith.constant 0 : index
    %54 = vector.load %arg6[%c48, %c0_35] : memref<72x384xf32, #tpu.memory_space<vmem>>, vector<4x286xf32>
    tpu.vector_store %arg6[%c48, %c0_35], %53 {strides = array<i32>} : memref<72x384xf32, #tpu.memory_space<vmem>>, vector<4x286xf32>,
    %c0_36 = arith.constant 0 : index
    %c0_37 = arith.constant 0 : index
    %c37 = arith.constant 37 : index
    %55 = vector.load %arg1[%c0_36, %c0_37, %c37] : memref<1x4x384xbf16, #tpu.memory_space<vmem>>, vector<1x4x286xbf16>
    %56 = vector.shape_cast %55 : vector<1x4x286xbf16> to vector<4x286xbf16>
    %57 = arith.extf %56 : vector<4x286xbf16> to vector<4x286xf32>
    %c56 = arith.constant 56 : index
    %c0_38 = arith.constant 0 : index
    %58 = vector.load %arg6[%c56, %c0_38] : memref<72x384xf32, #tpu.memory_space<vmem>>, vector<4x286xf32>
    tpu.vector_store %arg6[%c56, %c0_38], %57 {strides = array<i32>} : memref<72x384xf32, #tpu.memory_space<vmem>>, vector<4x286xf32>,
    %c0_39 = arith.constant 0 : index
    %c0_40 = arith.constant 0 : index
    %c38 = arith.constant 38 : index
    %59 = vector.load %arg1[%c0_39, %c0_40, %c38] : memref<1x4x384xbf16, #tpu.memory_space<vmem>>, vector<1x4x286xbf16>
    %60 = vector.shape_cast %59 : vector<1x4x286xbf16> to vector<4x286xbf16>
    %61 = arith.extf %60 : vector<4x286xbf16> to vector<4x286xf32>
    %c64 = arith.constant 64 : index
    %c0_41 = arith.constant 0 : index
    %62 = vector.load %arg6[%c64, %c0_41] : memref<72x384xf32, #tpu.memory_space<vmem>>, vector<4x286xf32>
    tpu.vector_store %arg6[%c64, %c0_41], %61 {strides = array<i32>} : memref<72x384xf32, #tpu.memory_space<vmem>>, vector<4x286xf32>,
    %c0_42 = arith.constant 0 : index
    %c0_43 = arith.constant 0 : index
    %63 = vector.load %arg6[%c0_42, %c0_43] : memref<72x384xf32, #tpu.memory_space<vmem>>, vector<72x384xf32>
    %64 = arith.truncf %63 : vector<72x384xf32> to vector<72x384xbf16>
    %cst_44 = arith.constant dense<0.000000e+00> : vector<8x384xf32>
    %65 = tpu.matmul %24, %64, %cst_44 {dimension_numbers = #tpu.dot_dimension_numbers<[1], [0], [0], [1], [0, 0, 1, 1], [], []>} : vector<8x72xbf16>, vector<72x384xbf16>, vector<8x384xf32> -> vector<8x384xf32>
    %66 = vector.extract_strided_slice %65 {offsets = [0, 0], sizes = [8, 286], strides = [1, 1]} : vector<8x384xf32> to vector<8x286xf32>
    %67 = vector.broadcast %26 : vector<8x1xf32> to vector<8x286xf32>
    %68 = arith.addf %66, %67 : vector<8x286xf32>
    %cst_45 = arith.constant 0.000000e+00 : f32
    %69 = vector.shape_cast %22 : vector<1x286xi1> to vector<1x286xi1>
    %70 = vector.broadcast %69 : vector<1x286xi1> to vector<8x286xi1>
    %71 = vector.broadcast %cst_45 : f32 to vector<8x286xf32>
    %72 = arith.select %70, %68, %71 : vector<8x286xi1>, vector<8x286xf32>
    %73 = arith.truncf %72 : vector<8x286xf32> to vector<8x286xbf16>
    %c0_46 = arith.constant 0 : index
    %c19_47 = arith.constant 19 : index
    %74 = vector.load %arg5[%c0_46, %c19_47] : memref<8x384xbf16, #tpu.memory_space<vmem>>, vector<8x286xbf16>
    tpu.vector_store %arg5[%c0_46, %c19_47], %73 {strides = array<i32>} : memref<8x384xbf16, #tpu.memory_space<vmem>>, vector<8x286xbf16>,
    %c1_48 = arith.constant 1 : index
    %c0_49 = arith.constant 0 : index
    %c0_50 = arith.constant 0 : index
    %75 = vector.load %arg2[%c1_48, %c0_49, %c0_50] : memref<2x8x72xbf16, #tpu.memory_space<vmem>>, vector<1x8x72xbf16>
    %76 = vector.shape_cast %75 : vector<1x8x72xbf16> to vector<8x72xbf16>
    %c1_51 = arith.constant 1 : index
    %c0_52 = arith.constant 0 : index
    %c0_53 = arith.constant 0 : index
    %77 = vector.load %arg3[%c1_51, %c0_52, %c0_53] : memref<2x8x1xf32, #tpu.memory_space<vmem>>, vector<1x8x1xf32>
    %78 = vector.shape_cast %77 : vector<1x8x1xf32> to vector<8x1xf32>
    %c0_54 = arith.constant 0 : index
    %c0_55 = arith.constant 0 : index
    %79 = vector.load %arg5[%c0_54, %c0_55] : memref<8x384xbf16, #tpu.memory_space<vmem>>, vector<8x286xbf16>
    %80 = arith.extf %79 : vector<8x286xbf16> to vector<8x286xf32>
    %c0_56 = arith.constant 0 : index
    %c0_57 = arith.constant 0 : index
    %81 = vector.load %arg6[%c0_56, %c0_57] : memref<72x384xf32, #tpu.memory_space<vmem>>, vector<8x286xf32>
    tpu.vector_store %arg6[%c0_56, %c0_57], %80 {strides = array<i32>} : memref<72x384xf32, #tpu.memory_space<vmem>>, vector<8x286xf32>,
    %c0_58 = arith.constant 0 : index
    %c1_59 = arith.constant 1 : index
    %82 = vector.load %arg5[%c0_58, %c1_59] : memref<8x384xbf16, #tpu.memory_space<vmem>>, vector<8x286xbf16>
    %83 = arith.extf %82 : vector<8x286xbf16> to vector<8x286xf32>
    %c8_60 = arith.constant 8 : index
    %c0_61 = arith.constant 0 : index
    %84 = vector.load %arg6[%c8_60, %c0_61] : memref<72x384xf32, #tpu.memory_space<vmem>>, vector<8x286xf32>
    tpu.vector_store %arg6[%c8_60, %c0_61], %83 {strides = array<i32>} : memref<72x384xf32, #tpu.memory_space<vmem>>, vector<8x286xf32>,
    %c0_62 = arith.constant 0 : index
    %c2_63 = arith.constant 2 : index
    %85 = vector.load %arg5[%c0_62, %c2_63] : memref<8x384xbf16, #tpu.memory_space<vmem>>, vector<8x286xbf16>
    %86 = arith.extf %85 : vector<8x286xbf16> to vector<8x286xf32>
    %c16_64 = arith.constant 16 : index
    %c0_65 = arith.constant 0 : index
    %87 = vector.load %arg6[%c16_64, %c0_65] : memref<72x384xf32, #tpu.memory_space<vmem>>, vector<8x286xf32>
    tpu.vector_store %arg6[%c16_64, %c0_65], %86 {strides = array<i32>} : memref<72x384xf32, #tpu.memory_space<vmem>>, vector<8x286xf32>,
    %c0_66 = arith.constant 0 : index
    %c18_67 = arith.constant 18 : index
    %88 = vector.load %arg5[%c0_66, %c18_67] : memref<8x384xbf16, #tpu.memory_space<vmem>>, vector<8x286xbf16>
    %89 = arith.extf %88 : vector<8x286xbf16> to vector<8x286xf32>
    %c24_68 = arith.constant 24 : index
    %c0_69 = arith.constant 0 : index
    %90 = vector.load %arg6[%c24_68, %c0_69] : memref<72x384xf32, #tpu.memory_space<vmem>>, vector<8x286xf32>
    tpu.vector_store %arg6[%c24_68, %c0_69], %89 {strides = array<i32>} : memref<72x384xf32, #tpu.memory_space<vmem>>, vector<8x286xf32>,
    %c0_70 = arith.constant 0 : index
    %c19_71 = arith.constant 19 : index
    %91 = vector.load %arg5[%c0_70, %c19_71] : memref<8x384xbf16, #tpu.memory_space<vmem>>, vector<8x286xbf16>
    %92 = arith.extf %91 : vector<8x286xbf16> to vector<8x286xf32>
    %c32_72 = arith.constant 32 : index
    %c0_73 = arith.constant 0 : index
    %93 = vector.load %arg6[%c32_72, %c0_73] : memref<72x384xf32, #tpu.memory_space<vmem>>, vector<8x286xf32>
    tpu.vector_store %arg6[%c32_72, %c0_73], %92 {strides = array<i32>} : memref<72x384xf32, #tpu.memory_space<vmem>>, vector<8x286xf32>,
    %c0_74 = arith.constant 0 : index
    %c20_75 = arith.constant 20 : index
    %94 = vector.load %arg5[%c0_74, %c20_75] : memref<8x384xbf16, #tpu.memory_space<vmem>>, vector<8x286xbf16>
    %95 = arith.extf %94 : vector<8x286xbf16> to vector<8x286xf32>
    %c40_76 = arith.constant 40 : index
    %c0_77 = arith.constant 0 : index
    %96 = vector.load %arg6[%c40_76, %c0_77] : memref<72x384xf32, #tpu.memory_space<vmem>>, vector<8x286xf32>
    tpu.vector_store %arg6[%c40_76, %c0_77], %95 {strides = array<i32>} : memref<72x384xf32, #tpu.memory_space<vmem>>, vector<8x286xf32>,
    %c0_78 = arith.constant 0 : index
    %c36_79 = arith.constant 36 : index
    %97 = vector.load %arg5[%c0_78, %c36_79] : memref<8x384xbf16, #tpu.memory_space<vmem>>, vector<8x286xbf16>
    %98 = arith.extf %97 : vector<8x286xbf16> to vector<8x286xf32>
    %c48_80 = arith.constant 48 : index
    %c0_81 = arith.constant 0 : index
    %99 = vector.load %arg6[%c48_80, %c0_81] : memref<72x384xf32, #tpu.memory_space<vmem>>, vector<8x286xf32>
    tpu.vector_store %arg6[%c48_80, %c0_81], %98 {strides = array<i32>} : memref<72x384xf32, #tpu.memory_space<vmem>>, vector<8x286xf32>,
    %c0_82 = arith.constant 0 : index
    %c37_83 = arith.constant 37 : index
    %100 = vector.load %arg5[%c0_82, %c37_83] : memref<8x384xbf16, #tpu.memory_space<vmem>>, vector<8x286xbf16>
    %101 = arith.extf %100 : vector<8x286xbf16> to vector<8x286xf32>
    %c56_84 = arith.constant 56 : index
    %c0_85 = arith.constant 0 : index
    %102 = vector.load %arg6[%c56_84, %c0_85] : memref<72x384xf32, #tpu.memory_space<vmem>>, vector<8x286xf32>
    tpu.vector_store %arg6[%c56_84, %c0_85], %101 {strides = array<i32>} : memref<72x384xf32, #tpu.memory_space<vmem>>, vector<8x286xf32>,
    %c0_86 = arith.constant 0 : index
    %c38_87 = arith.constant 38 : index
    %103 = vector.load %arg5[%c0_86, %c38_87] : memref<8x384xbf16, #tpu.memory_space<vmem>>, vector<8x286xbf16>
    %104 = arith.extf %103 : vector<8x286xbf16> to vector<8x286xf32>
    %c64_88 = arith.constant 64 : index
    %c0_89 = arith.constant 0 : index
    %105 = vector.load %arg6[%c64_88, %c0_89] : memref<72x384xf32, #tpu.memory_space<vmem>>, vector<8x286xf32>
    tpu.vector_store %arg6[%c64_88, %c0_89], %104 {strides = array<i32>} : memref<72x384xf32, #tpu.memory_space<vmem>>, vector<8x286xf32>,
    %c0_90 = arith.constant 0 : index
    %c0_91 = arith.constant 0 : index
    %106 = vector.load %arg6[%c0_90, %c0_91] : memref<72x384xf32, #tpu.memory_space<vmem>>, vector<72x384xf32>
    %107 = arith.truncf %106 : vector<72x384xf32> to vector<72x384xbf16>
    %cst_92 = arith.constant dense<0.000000e+00> : vector<8x384xf32>
    %108 = tpu.matmul %76, %107, %cst_92 {dimension_numbers = #tpu.dot_dimension_numbers<[1], [0], [0], [1], [0, 0, 1, 1], [], []>} : vector<8x72xbf16>, vector<72x384xbf16>, vector<8x384xf32> -> vector<8x384xf32>
    %109 = vector.extract_strided_slice %108 {offsets = [0, 0], sizes = [8, 286], strides = [1, 1]} : vector<8x384xf32> to vector<8x286xf32>
    %110 = vector.broadcast %78 : vector<8x1xf32> to vector<8x286xf32>
    %111 = arith.addf %109, %110 : vector<8x286xf32>
    %112 = vector.extract_strided_slice %111 {offsets = [0, 0], sizes = [8, 16], strides = [1, 1]} : vector<8x286xf32> to vector<8x16xf32>
    %113 = vector.extract_strided_slice %111 {offsets = [0, 18], sizes = [8, 16], strides = [1, 1]} : vector<8x286xf32> to vector<8x16xf32>
    %114 = vector.extract_strided_slice %111 {offsets = [0, 36], sizes = [8, 16], strides = [1, 1]} : vector<8x286xf32> to vector<8x16xf32>
    %115 = vector.extract_strided_slice %111 {offsets = [0, 54], sizes = [8, 16], strides = [1, 1]} : vector<8x286xf32> to vector<8x16xf32>
    %116 = vector.extract_strided_slice %111 {offsets = [0, 72], sizes = [8, 16], strides = [1, 1]} : vector<8x286xf32> to vector<8x16xf32>
    %117 = vector.extract_strided_slice %111 {offsets = [0, 90], sizes = [8, 16], strides = [1, 1]} : vector<8x286xf32> to vector<8x16xf32>
    %118 = vector.extract_strided_slice %111 {offsets = [0, 108], sizes = [8, 16], strides = [1, 1]} : vector<8x286xf32> to vector<8x16xf32>
    %119 = vector.extract_strided_slice %111 {offsets = [0, 126], sizes = [8, 16], strides = [1, 1]} : vector<8x286xf32> to vector<8x16xf32>
    %120 = vector.extract_strided_slice %111 {offsets = [0, 144], sizes = [8, 16], strides = [1, 1]} : vector<8x286xf32> to vector<8x16xf32>
    %121 = vector.extract_strided_slice %111 {offsets = [0, 162], sizes = [8, 16], strides = [1, 1]} : vector<8x286xf32> to vector<8x16xf32>
    %122 = vector.extract_strided_slice %111 {offsets = [0, 180], sizes = [8, 16], strides = [1, 1]} : vector<8x286xf32> to vector<8x16xf32>
    %123 = vector.extract_strided_slice %111 {offsets = [0, 198], sizes = [8, 16], strides = [1, 1]} : vector<8x286xf32> to vector<8x16xf32>
    %124 = vector.extract_strided_slice %111 {offsets = [0, 216], sizes = [8, 16], strides = [1, 1]} : vector<8x286xf32> to vector<8x16xf32>
    %125 = vector.extract_strided_slice %111 {offsets = [0, 234], sizes = [8, 16], strides = [1, 1]} : vector<8x286xf32> to vector<8x16xf32>
    %126 = vector.extract_strided_slice %111 {offsets = [0, 252], sizes = [8, 16], strides = [1, 1]} : vector<8x286xf32> to vector<8x16xf32>
    %127 = vector.extract_strided_slice %111 {offsets = [0, 270], sizes = [8, 16], strides = [1, 1]} : vector<8x286xf32> to vector<8x16xf32>
    %128 = tpu.concatenate %112, %113, %114, %115, %116, %117, %118, %119, %120, %121, %122, %123, %124, %125, %126, %127 in 1 : vector<8x16xf32>, vector<8x16xf32>, vector<8x16xf32>, vector<8x16xf32>, vector<8x16xf32>, vector<8x16xf32>, vector<8x16xf32>, vector<8x16xf32>, vector<8x16xf32>, vector<8x16xf32>, vector<8x16xf32>, vector<8x16xf32>, vector<8x16xf32>, vector<8x16xf32>, vector<8x16xf32>, vector<8x16xf32> -> vector<8x256xf32>
    %c0_93 = arith.constant 0 : index
    %c0_94 = arith.constant 0 : index
    %c0_95 = arith.constant 0 : index
    %129 = vector.load %arg4[%c0_93, %c0_94, %c0_95] : memref<1x8x256xf32, #tpu.memory_space<vmem>>, vector<1x8x256xf32>
    %130 = vector.shape_cast %129 : vector<1x8x256xf32> to vector<8x256xf32>
    %131 = vector.shape_cast %128 : vector<8x256xf32> to vector<1x8x256xf32>
    tpu.vector_store %arg4[%c0_93, %c0_94, %c0_95], %131 {strides = array<i32>} : memref<1x8x256xf32, #tpu.memory_space<vmem>>, vector<1x8x256xf32>,
    return
  }
  func.func @transform_0(%arg0: i32) -> (i32, i32, i32) {
    %c0_i32 = arith.constant 0 : i32
    %c0_i32_0 = arith.constant 0 : i32
    %c0_i32_1 = arith.constant 0 : i32
    return %arg0, %c0_i32, %c0_i32_0 : i32, i32, i32
  }
  func.func @transform_1(%arg0: i32) -> (i32, i32, i32) {
    %c0_i32 = arith.constant 0 : i32
    %c0_i32_0 = arith.constant 0 : i32
    %c0_i32_1 = arith.constant 0 : i32
    %c0_i32_2 = arith.constant 0 : i32
    return %c0_i32, %c0_i32_0, %c0_i32_1 : i32, i32, i32
  }
  func.func @transform_2(%arg0: i32) -> (i32, i32, i32) {
    %c0_i32 = arith.constant 0 : i32
    %c0_i32_0 = arith.constant 0 : i32
    %c0_i32_1 = arith.constant 0 : i32
    %c0_i32_2 = arith.constant 0 : i32
    return %c0_i32, %c0_i32_0, %c0_i32_1 : i32, i32, i32
  }
  func.func @transform_3(%arg0: i32) -> (i32, i32, i32) {
    %c0_i32 = arith.constant 0 : i32
    %c0_i32_0 = arith.constant 0 : i32
    %c0_i32_1 = arith.constant 0 : i32
    return %arg0, %c0_i32, %c0_i32_0 : i32, i32, i32
  }
}

</mosaic_0001>

<llo_original>
// kernel: fractal_network_forward.1
$region0: #{fractal_network_forward.1}
  #allocation0 [shape = 'u32[]', space=smem, size = 0x4, offset = 0x4, fixed_abs, tag = 'smem constant byte address 0x4 - core index']
  #allocation1 [shape = 'u32[144,128]{1,0:T(1,128)}', space=vmem, size = 0x12000, scoped, tag = 'internal scratch']
  #allocation2 [shape = 'bf16[8,384]{1,0:T(8,128)(2,1)}', space=vmem, size = 0x1800, scoped, tag = 'scratch operand']
  #allocation3 [shape = 'f32[72,384]{1,0:T(8,128)}', space=vmem, size = 0x1b000, scoped, tag = 'scratch operand']
  %s0 = inlined_call_operand.vmem [shape: bf16[2,4,384], index: 0, kind: input, shape index: {}]
  %s1 = inlined_call_operand.vmem [shape: bf16[2,8,72], index: 1, kind: input, shape index: {}]
  %s2 = inlined_call_operand.vmem [shape: f32[2,8,1], index: 2, kind: input, shape index: {}]
  %s3 = inlined_call_operand.vmem [shape: f32[2,8,256], index: 3, kind: output, shape index: {}]
  %s4 = sld [smem:[#allocation0]]
  $region45: #{fractal_network_forward.1} parent=0
    _
  %s6 = ssub.s32 1, %s4
  %s7 = scalar_select 0, %s6, %s4
  loop: start=0, step=1, limit=4
  $region2: #{fractal_network_forward.1} parent=0 // loop_pre_header
    _
  $region3: #{fractal_network_forward.1} parent=0 // loop_header
    %s9 = sphi 0, %s13
    %p10 = scmp.ge.s32.totalorder %s9, 4
    %s19 = sphi 0, %s21
    %s22 = sphi 0, %s19
    %s23 = sphi 0, %s22
    %s39 = sphi 0, %s23
    %s43 = sphi 0, %s43
    %s45 = sphi 0, %s43
    %s46 = sphi 0, %s45
    %s60 = sphi 0, %s46
    %s64 = sphi 0, %s64
    %s66 = sphi 0, %s64
    %s67 = sphi 0, %s66
    %s81 = sphi 0, %s67
    %s87 = sphi 0, %s89
    %s90 = sphi 0, %s87
    %s91 = sphi 0, %s90
    %s107 = sphi 0, %s91
  $region4: #{fractal_network_forward.1} parent=0 // loop_header_branch
    %12 = sbr.rel (%p10) target = $region8
  $region5: #{fractal_network_forward.1} parent=0 // loop_body
    %s14 = ssub.s32 %s9, 1
    %s15 = ssub.s32 %s9, 2
    %s16 = sadd.s32 %s9, 1
    %s17 = ssub.s32 %s9, %s16
    %p18 = scmp.eq.s32.totalorder %s17, 0
    %s20 = sadd.s32 %s19, 1
    %s21 = scalar_select %p18, %s19, %s20
    %p24 = pneg %p18
    %p25 = scmp.eq.s32.totalorder %s9, 1
    %p26 = por %p24, %p25
    %p27 = scmp.ne.s32.totalorder %s19, %s22
    %p28 = scmp.eq.s32.totalorder %s9, 0
    %p29 = por %p27, %p28
    %p30 = scmp.ne.s32.totalorder %s19, %s22
    %p31 = scmp.eq.s32.totalorder %s14, 1
    %p32 = por %p30, %p31
    %p33 = scmp.ne.s32.totalorder %s22, %s23
    %p34 = scmp.eq.s32.totalorder %s14, 0
    %p35 = por %p33, %p34
    %p36 = scmp.ne.s32.totalorder %s22, %s23
    %p37 = scmp.eq.s32.totalorder %s15, 1
    %p38 = por %p36, %p37
    %p40 = scmp.ne.s32.totalorder %s23, %s39
    %p41 = scmp.eq.s32.totalorder %s15, 0
    %p42 = por %p40, %p41
    %s44 = sadd.s32 %s43, 1
    %p47 = scmp.eq.s32.totalorder %s9, 1
    %p48 = scmp.ne.s32.totalorder %s43, %s45
    %p49 = scmp.eq.s32.totalorder %s9, 0
    %p50 = por %p48, %p49
    %p51 = scmp.ne.s32.totalorder %s43, %s45
    %p52 = scmp.eq.s32.totalorder %s14, 1
    %p53 = por %p51, %p52
    %p54 = scmp.ne.s32.totalorder %s45, %s46
    %p55 = scmp.eq.s32.totalorder %s14, 0
    %p56 = por %p54, %p55
    %p57 = scmp.ne.s32.totalorder %s45, %s46
    %p58 = scmp.eq.s32.totalorder %s15, 1
    %p59 = por %p57, %p58
    %p61 = scmp.ne.s32.totalorder %s46, %s60
    %p62 = scmp.eq.s32.totalorder %s15, 0
    %p63 = por %p61, %p62
    %s65 = sadd.s32 %s64, 1
    %p68 = scmp.eq.s32.totalorder %s9, 1
    %p69 = scmp.ne.s32.totalorder %s64, %s66
    %p70 = scmp.eq.s32.totalorder %s9, 0
    %p71 = por %p69, %p70
    %p72 = scmp.ne.s32.totalorder %s64, %s66
    %p73 = scmp.eq.s32.totalorder %s14, 1
    %p74 = por %p72, %p73
    %p75 = scmp.ne.s32.totalorder %s66, %s67
    %p76 = scmp.eq.s32.totalorder %s14, 0
    %p77 = por %p75, %p76
    %p78 = scmp.ne.s32.totalorder %s66, %s67
    %p79 = scmp.eq.s32.totalorder %s15, 1
    %p80 = por %p78, %p79
    %p82 = scmp.ne.s32.totalorder %s67, %s81
    %p83 = scmp.eq.s32.totalorder %s15, 0
    %p84 = por %p82, %p83
    %s85 = ssub.s32 %s9, %s16
    %p86 = scmp.eq.s32.totalorder %s85, 0
    %s88 = sadd.s32 %s87, 1
    %s89 = scalar_select %p86, %s87, %s88
    %p92 = pneg %p86
    %p93 = scmp.eq.s32.totalorder %s9, 1
    %p94 = por %p92, %p93
    %p95 = scmp.ne.s32.totalorder %s87, %s90
    %p96 = scmp.eq.s32.totalorder %s9, 0
    %p97 = por %p95, %p96
    %p98 = scmp.ne.s32.totalorder %s87, %s90
    %p99 = scmp.eq.s32.totalorder %s14, 1
    %p100 = por %p98, %p99
    %p101 = scmp.ne.s32.totalorder %s90, %s91
    %p102 = scmp.eq.s32.totalorder %s14, 0
    %p103 = por %p101, %p102
    %p104 = scmp.ne.s32.totalorder %s90, %s91
    %p105 = scmp.eq.s32.totalorder %s15, 1
    %p106 = por %p104, %p105
    %p108 = scmp.ne.s32.totalorder %s91, %s107
    %p109 = scmp.eq.s32.totalorder %s15, 0
    %p110 = por %p108, %p109
    %p111 = scmp.le.s32.totalorder 1, %s9
    %p112 = scmp.lt.s32.totalorder %s9, 3
    %p113 = pnand %p111, %p112
    %p114 = pneg %p113
    // Predicated region
    $region9: #{fractal_network_forward.1} parent=5 // pred_check
      _
    $region10: #{fractal_network_forward.1} parent=5 // pred_check_branch
      %116 = sbr.rel (%p113) target = $region12
    $region11: #{fractal_network_forward.1} parent=5 // pred_region
      %s117 = ssub.s32 %s9, 1
      // Predicated region
      $region13: #{fractal_network_forward.1} parent=11 // pred_check
        %p118 = pneg %p56
      $region14: #{fractal_network_forward.1} parent=11 // pred_check_branch
        %120 = sbr.rel (%p118) target = $region16
      $region15: #{fractal_network_forward.1} parent=11 // pred_region
        _
      $region16: #{fractal_network_forward.1} parent=11 // pred_fallthru
        _
      // Predicated region
      $region17: #{fractal_network_forward.1} parent=11 // pred_check
        %p121 = pneg %p77
      $region18: #{fractal_network_forward.1} parent=11 // pred_check_branch
        %123 = sbr.rel (%p121) target = $region20
      $region19: #{fractal_network_forward.1} parent=11 // pred_region
        _
      $region20: #{fractal_network_forward.1} parent=11 // pred_fallthru
        _
    $region12: #{fractal_network_forward.1} parent=5 // pred_fallthru
      _
    %p124 = scmp.lt.s32.totalorder %s9, 2
    // Predicated region
    $region21: #{fractal_network_forward.1} parent=5 // pred_check
      %p125 = pneg %p124
    $region22: #{fractal_network_forward.1} parent=5 // pred_check_branch
      %127 = sbr.rel (%p125) target = $region24
    $region23: #{fractal_network_forward.1} parent=5 // pred_region
      // Predicated region
      $region25: #{fractal_network_forward.1} parent=23 // pred_check
        %p128 = pneg %p29
      $region26: #{fractal_network_forward.1} parent=23 // pred_check_branch
        %130 = sbr.rel (%p128) target = $region28
      $region27: #{fractal_network_forward.1} parent=23 // pred_region
        %p131 = scmp.lt.s32.totalorder %s9, 1
        %s132 = scalar_select %p131, %s9, 1
        %s133 = smul.addr %s132, 3
        %s134 = smul.addr %s133, 2
        %s135 = scalar_lea.vmem %s0, %s134
      $region28: #{fractal_network_forward.1} parent=23 // pred_fallthru
        _
    $region24: #{fractal_network_forward.1} parent=5 // pred_fallthru
      _
    %p136 = scmp.le.s32.totalorder 1, %s9
    %p137 = scmp.lt.s32.totalorder %s9, 3
    %p138 = pnand %p136, %p137
    %p139 = pneg %p138
    // Predicated region
    $region29: #{fractal_network_forward.1} parent=5 // pred_check
      _
    $region30: #{fractal_network_forward.1} parent=5 // pred_check_branch
      %141 = sbr.rel (%p138) target = $region32
    $region31: #{fractal_network_forward.1} parent=5 // pred_region
      %s142 = ssub.s32 %s9, 1
      %p143 = scmp.lt.s32.totalorder %s14, 1
      %s144 = scalar_select %p143, %s14, 1
      %s145 = smul.addr %s144, 3
      %s146 = smul.addr %s145, 2
      %s147 = scalar_lea.vmem %s0, %s146
      %p148 = pneg %p35
      %p149 = pneg %p32
      %p150 = pneg %p56
      %p151 = pneg %p53
      %p152 = pneg %p77
      %p153 = pneg %p74
      %p154 = pneg %p103
      %p155 = pneg %p100
      %p156 = scmp.lt.s32.totalorder %s14, 1
      %s157 = scalar_select %p156, %s14, 1
      %s158 = smul.addr %s157, 2
      %s159 = smul.addr %s158, 8
      %s160 = scalar_lea.vmem %s3, %s159
      %p161 = scmp.lt.s32.totalorder %s14, 1
      %s162 = scalar_select %p161, %s14, 1
      %s163 = smul.addr %s162, 3
      %s164 = smul.addr %s163, 2
      %s165 = scalar_lea.vmem %s0, %s164
      %p166 = scmp.lt.s32.totalorder %s14, 1
      %s167 = scalar_select %p166, %s14, 1
      %s168 = smul.addr %s167, 2
      %s169 = smul.addr %s168, 8
      %s170 = scalar_lea.vmem %s3, %s169
      %172 = vst [vmem:[#allocation2] sm:$0xff] 0
      %173 = vst [vmem:[#allocation2 + $0x8] sm:$0xf] 0
      %174 = vst [vmem:[#allocation3] sm:$0xff] 0.0
      %175 = vst [vmem:[#allocation3 + $0x8] sm:$0xff] 0.0
      %176 = vst [vmem:[#allocation3 + $0x10] sm:$0xff] 0.0
      %177 = vst [vmem:[#allocation3 + $0x18] sm:$0xff] 0.0
      %178 = vst [vmem:[#allocation3 + $0x20] sm:$0xff] 0.0
      %179 = vst [vmem:[#allocation3 + $0x28] sm:$0xff] 0.0
      %180 = vst [vmem:[#allocation3 + $0x30] sm:$0xff] 0.0
      %181 = vst [vmem:[#allocation3 + $0x38] sm:$0xff] 0.0
      %182 = vst [vmem:[#allocation3 + $0x40] sm:$0xff] 0.0
      %183 = vst [vmem:[#allocation3 + $0x48] sm:$0xff] 0.0
      %184 = vst [vmem:[#allocation3 + $0x50] sm:$0xff] 0.0
      %185 = vst [vmem:[#allocation3 + $0x58] sm:$0xff] 0.0
      %186 = vst [vmem:[#allocation3 + $0x60] sm:$0xff] 0.0
      %187 = vst [vmem:[#allocation3 + $0x68] sm:$0xff] 0.0
      %188 = vst [vmem:[#allocation3 + $0x70] sm:$0xff] 0.0
      %189 = vst [vmem:[#allocation3 + $0x78] sm:$0xff] 0.0
      %190 = vst [vmem:[#allocation3 + $0x80] sm:$0xff] 0.0
      %191 = vst [vmem:[#allocation3 + $0x88] sm:$0xff] 0.0
      %192 = vst [vmem:[#allocation3 + $0x90] sm:$0xff] 0.0
      %193 = vst [vmem:[#allocation3 + $0x98] sm:$0xff] 0.0
      %194 = vst [vmem:[#allocation3 + $0xa0] sm:$0xff] 0.0
      %195 = vst [vmem:[#allocation3 + $0xa8] sm:$0xff] 0.0
      %196 = vst [vmem:[#allocation3 + $0xb0] sm:$0xff] 0.0
      %197 = vst [vmem:[#allocation3 + $0xb8] sm:$0xff] 0.0
      %198 = vst [vmem:[#allocation3 + $0xc0] sm:$0xff] 0.0
      %199 = vst [vmem:[#allocation3 + $0xc8] sm:$0xff] 0.0
      %200 = vst [vmem:[#allocation3 + $0xd0] sm:$0xff] 0.0
      %v201 = vlaneseq
      %v202 = vand.u32 %v201, 127
      %v203 = vadd.s32 %v202, 128
      %v204 = vadd.s32 %v202, 256
      %vm205 = vcmp.lt.s32.totalorder %v202, 0
      %v206 = vsub.s32 0, %v202
      %v207 = vsel %vm205, %v206, %v202
      %v208 = vmul.u32.u64.compose %v207, 3817748708
      %v209 = vextract.low.u32 %v208
      %v210 = vextract.high.u32 %v208
      %v211 = vshrl.u32 %v210, 4
      %v212 = vmul.u32 %v211, 18
      %v213 = vsub.s32 %v207, %v212
      %v214 = vsub.s32 0, %v213
      %v215 = vsel %vm205, %v214, %v213
      %vm216 = vcmp.lt.s32.totalorder %v203, 0
      %v217 = vsub.s32 0, %v203
      %v218 = vsel %vm216, %v217, %v203
      %v219 = vmul.u32.u64.compose %v218, 3817748708
      %v220 = vextract.low.u32 %v219
      %v221 = vextract.high.u32 %v219
      %v222 = vshrl.u32 %v221, 4
      %v223 = vmul.u32 %v222, 18
      %v224 = vsub.s32 %v218, %v223
      %v225 = vsub.s32 0, %v224
      %v226 = vsel %vm216, %v225, %v224
      %vm227 = vcmp.lt.s32.totalorder %v204, 0
      %v228 = vsub.s32 0, %v204
      %v229 = vsel %vm227, %v228, %v204
      %v230 = vmul.u32.u64.compose %v229, 3817748708
      %v231 = vextract.low.u32 %v230
      %v232 = vextract.high.u32 %v230
      %v233 = vshrl.u32 %v232, 4
      %v234 = vmul.u32 %v233, 18
      %v235 = vsub.s32 %v229, %v234
      %v236 = vsub.s32 0, %v235
      %v237 = vsel %vm227, %v236, %v235
      %vm238 = vcmp.ne.s32.totalorder %v215, 0
      %vm239 = vcmp.ne.s32.totalorder %v226, 0
      %vm240 = vcmp.ne.s32.totalorder %v237, 0
      %vm241 = vcmp.lt.s32.totalorder %v215, 0
      %vm242 = vcmp.lt.s32.totalorder %v226, 0
      %vm243 = vcmp.lt.s32.totalorder %v237, 0
      %vm244 = vmand %vm241, %vm238
      %vm245 = vmand %vm242, %vm239
      %vm246 = vmand %vm243, %vm240
      %v247 = vadd.s32 %v215, 18
      %v248 = vadd.s32 %v226, 18
      %v249 = vadd.s32 %v237, 18
      %v250 = vsel %vm244, %v247, %v215
      %v251 = vsel %vm245, %v248, %v226
      %v252 = vsel %vm246, %v249, %v237
      %vm253 = vcmp.lt.s32.totalorder %v250, 16
      %vm254 = vcmp.lt.s32.totalorder %v251, 16
      %vm255 = vcmp.lt.s32.totalorder %v252, 16
      %v256 = vld [vmem:[%s1] sm:$0xf]
      %v257 = vld [vmem:[%s2] sm:$0xff]
      %v258 = vld [vmem:[%s165] sm:$0x3f]
      %v259 = vunpack.c.l.bf16 %v258
      %v260 = vunpack.c.h.bf16 %v258
      %v262 = vcombine.high %v259, %v259
      %264 = vst [vmem:[#allocation3] sm:$0xf] %v259
      %265 = vst [vmem:[#allocation3 + $0x8] sm:$0xf] %v262
      %vm266 = vcmask 240640
      %267 = vst.msk [vmem:[#allocation3 + $0x10] sm:$0xf] %vm266, %v260
      %v268 = vld [vmem:[%s165] sm:$0x3f]
      %v269 = vunpack.c.l.bf16 %v268
      %v270 = vunpack.c.h.bf16 %v268
      %v273 = vcombine.high %v269, %v269
      %274 = vrot.lane.b32.xlu0 %v269, 127
      %v275 = vpop.permute.xlu0 %274
      %276 = vrot.lane.b32.xlu0 %v273, 127
      %v277 = vpop.permute.xlu0 %276
      %278 = vrot.lane.b32.xlu0 %v270, 127
      %v279 = vpop.permute.xlu0 %278
      %vm280 = vcmask 1039360
      %v281 = vsel %vm280, %v275, %v277
      %v282 = vsel %vm280, %v277, %v279
      %286 = vst [vmem:[#allocation3 + $0x18] sm:$0xf] %v281
      %287 = vst [vmem:[#allocation3 + $0x20] sm:$0xf] %v282
      %288 = vst.msk [vmem:[#allocation3 + $0x28] sm:$0xf] %vm266, %v279
      %v289 = vld [vmem:[%s165] sm:$0x3f]
      %v290 = vunpack.c.l.bf16 %v289
      %v291 = vunpack.c.h.bf16 %v289
      %v294 = vcombine.high %v290, %v290
      %295 = vrot.lane.b32.xlu0 %v290, 126
      %v296 = vpop.permute.xlu0 %295
      %297 = vrot.lane.b32.xlu0 %v294, 126
      %v298 = vpop.permute.xlu0 %297
      %299 = vrot.lane.b32.xlu0 %v291, 126
      %v300 = vpop.permute.xlu0 %299
      %vm301 = vcmask 1031168
      %v302 = vsel %vm301, %v296, %v298
      %v303 = vsel %vm301, %v298, %v300
      %307 = vst [vmem:[#allocation3 + $0x30] sm:$0xf] %v302
      %308 = vst [vmem:[#allocation3 + $0x38] sm:$0xf] %v303
      %309 = vst.msk [vmem:[#allocation3 + $0x40] sm:$0xf] %vm266, %v300
      %v310 = vld [vmem:[%s165] sm:$0x3f]
      %v311 = vunpack.c.l.bf16 %v310
      %v312 = vunpack.c.h.bf16 %v310
      %v315 = vcombine.high %v311, %v311
      %316 = vrot.lane.b32.xlu0 %v311, 110
      %v317 = vpop.permute.xlu0 %316
      %318 = vrot.lane.b32.xlu0 %v315, 110
      %v319 = vpop.permute.xlu0 %318
      %320 = vrot.lane.b32.xlu0 %v312, 110
      %v321 = vpop.permute.xlu0 %320
      %vm322 = vcmask 900096
      %v323 = vsel %vm322, %v317, %v319
      %v324 = vsel %vm322, %v319, %v321
      %328 = vst [vmem:[#allocation3 + $0x48] sm:$0xf] %v323
      %329 = vst [vmem:[#allocation3 + $0x50] sm:$0xf] %v324
      %330 = vst.msk [vmem:[#allocation3 + $0x58] sm:$0xf] %vm266, %v321
      %v331 = vld [vmem:[%s165] sm:$0x3f]
      %v332 = vunpack.c.l.bf16 %v331
      %v333 = vunpack.c.h.bf16 %v331
      %v336 = vcombine.high %v332, %v332
      %337 = vrot.lane.b32.xlu0 %v332, 109
      %v338 = vpop.permute.xlu0 %337
      %339 = vrot.lane.b32.xlu0 %v336, 109
      %v340 = vpop.permute.xlu0 %339
      %341 = vrot.lane.b32.xlu0 %v333, 109
      %v342 = vpop.permute.xlu0 %341
      %vm343 = vcmask 891904
      %v344 = vsel %vm343, %v338, %v340
      %v345 = vsel %vm343, %v340, %v342
      %349 = vst [vmem:[#allocation3 + $0x60] sm:$0xf] %v344
      %350 = vst [vmem:[#allocation3 + $0x68] sm:$0xf] %v345
      %351 = vst.msk [vmem:[#allocation3 + $0x70] sm:$0xf] %vm266, %v342
      %v352 = vld [vmem:[%s165] sm:$0x3f]
      %v353 = vunpack.c.l.bf16 %v352
      %v354 = vunpack.c.h.bf16 %v352
      %v357 = vcombine.high %v353, %v353
      %358 = vrot.lane.b32.xlu0 %v353, 108
      %v359 = vpop.permute.xlu0 %358
      %360 = vrot.lane.b32.xlu0 %v357, 108
      %v361 = vpop.permute.xlu0 %360
      %362 = vrot.lane.b32.xlu0 %v354, 108
      %v363 = vpop.permute.xlu0 %362
      %vm364 = vcmask 883712
      %v365 = vsel %vm364, %v359, %v361
      %v366 = vsel %vm364, %v361, %v363
      %370 = vst [vmem:[#allocation3 + $0x78] sm:$0xf] %v365
      %371 = vst [vmem:[#allocation3 + $0x80] sm:$0xf] %v366
      %372 = vst.msk [vmem:[#allocation3 + $0x88] sm:$0xf] %vm266, %v363
      %v373 = vld [vmem:[%s165] sm:$0x3f]
      %v374 = vunpack.c.l.bf16 %v373
      %v375 = vunpack.c.h.bf16 %v373
      %v378 = vcombine.high %v374, %v374
      %379 = vrot.lane.b32.xlu0 %v374, 92
      %v380 = vpop.permute.xlu0 %379
      %381 = vrot.lane.b32.xlu0 %v378, 92
      %v382 = vpop.permute.xlu0 %381
      %383 = vrot.lane.b32.xlu0 %v375, 92
      %v384 = vpop.permute.xlu0 %383
      %vm385 = vcmask 752640
      %v386 = vsel %vm385, %v380, %v382
      %v387 = vsel %vm385, %v382, %v384
      %391 = vst [vmem:[#allocation3 + $0x90] sm:$0xf] %v386
      %392 = vst [vmem:[#allocation3 + $0x98] sm:$0xf] %v387
      %393 = vst.msk [vmem:[#allocation3 + $0xa0] sm:$0xf] %vm266, %v384
      %v394 = vld [vmem:[%s165] sm:$0x3f]
      %v395 = vunpack.c.l.bf16 %v394
      %v396 = vunpack.c.h.bf16 %v394
      %v399 = vcombine.high %v395, %v395
      %400 = vrot.lane.b32.xlu0 %v395, 91
      %v401 = vpop.permute.xlu0 %400
      %402 = vrot.lane.b32.xlu0 %v399, 91
      %v403 = vpop.permute.xlu0 %402
      %404 = vrot.lane.b32.xlu0 %v396, 91
      %v405 = vpop.permute.xlu0 %404
      %vm406 = vcmask 744448
      %v407 = vsel %vm406, %v401, %v403
      %v408 = vsel %vm406, %v403, %v405
      %412 = vst [vmem:[#allocation3 + $0xa8] sm:$0xf] %v407
      %413 = vst [vmem:[#allocation3 + $0xb0] sm:$0xf] %v408
      %414 = vst.msk [vmem:[#allocation3 + $0xb8] sm:$0xf] %vm266, %v405
      %v415 = vld [vmem:[%s165] sm:$0x3f]
      %v416 = vunpack.c.l.bf16 %v415
      %v417 = vunpack.c.h.bf16 %v415
      %v420 = vcombine.high %v416, %v416
      %421 = vrot.lane.b32.xlu0 %v416, 90
      %v422 = vpop.permute.xlu0 %421
      %423 = vrot.lane.b32.xlu0 %v420, 90
      %v424 = vpop.permute.xlu0 %423
      %425 = vrot.lane.b32.xlu0 %v417, 90
      %v426 = vpop.permute.xlu0 %425
      %vm427 = vcmask 736256
      %v428 = vsel %vm427, %v422, %v424
      %v429 = vsel %vm427, %v424, %v426
      %433 = vst [vmem:[#allocation3 + $0xc0] sm:$0xf] %v428
      %434 = vst [vmem:[#allocation3 + $0xc8] sm:$0xf] %v429
      %435 = vst.msk [vmem:[#allocation3 + $0xd0] sm:$0xf] %vm266, %v426
      %v436 = vld [vmem:[#allocation3] sm:$0xff]
      %v437 = vld [vmem:[#allocation3 + $0x8] sm:$0xff]
      %v438 = vld [vmem:[#allocation3 + $0x10] sm:$0xff]
      %v439 = vld [vmem:[#allocation3 + $0x18] sm:$0xff]
      %v440 = vld [vmem:[#allocation3 + $0x20] sm:$0xff]
      %v441 = vld [vmem:[#allocation3 + $0x28] sm:$0xff]
      %v442 = vld [vmem:[#allocation3 + $0x30] sm:$0xff]
      %v443 = vld [vmem:[#allocation3 + $0x38] sm:$0xff]
      %v444 = vld [vmem:[#allocation3 + $0x40] sm:$0xff]
      %v445 = vld [vmem:[#allocation3 + $0x48] sm:$0xff]
      %v446 = vld [vmem:[#allocation3 + $0x50] sm:$0xff]
      %v447 = vld [vmem:[#allocation3 + $0x58] sm:$0xff]
      %v448 = vld [vmem:[#allocation3 + $0x60] sm:$0xff]
      %v449 = vld [vmem:[#allocation3 + $0x68] sm:$0xff]
      %v450 = vld [vmem:[#allocation3 + $0x70] sm:$0xff]
      %v451 = vld [vmem:[#allocation3 + $0x78] sm:$0xff]
      %v452 = vld [vmem:[#allocation3 + $0x80] sm:$0xff]
      %v453 = vld [vmem:[#allocation3 + $0x88] sm:$0xff]
      %v454 = vld [vmem:[#allocation3 + $0x90] sm:$0xff]
      %v455 = vld [vmem:[#allocation3 + $0x98] sm:$0xff]
      %v456 = vld [vmem:[#allocation3 + $0xa0] sm:$0xff]
      %v457 = vld [vmem:[#allocation3 + $0xa8] sm:$0xff]
      %v458 = vld [vmem:[#allocation3 + $0xb0] sm:$0xff]
      %v459 = vld [vmem:[#allocation3 + $0xb8] sm:$0xff]
      %v460 = vld [vmem:[#allocation3 + $0xc0] sm:$0xff]
      %v461 = vld [vmem:[#allocation3 + $0xc8] sm:$0xff]
      %v462 = vld [vmem:[#allocation3 + $0xd0] sm:$0xff]
      %v463 = vpack.c.bf16 %v439, %v436
      %v464 = vpack.c.bf16 %v440, %v437
      %v465 = vpack.c.bf16 %v441, %v438
      %v466 = vpack.c.bf16 %v445, %v442
      %v467 = vpack.c.bf16 %v446, %v443
      %v468 = vpack.c.bf16 %v447, %v444
      %v469 = vpack.c.bf16 %v451, %v448
      %v470 = vpack.c.bf16 %v452, %v449
      %v471 = vpack.c.bf16 %v453, %v450
      %v472 = vpack.c.bf16 %v457, %v454
      %v473 = vpack.c.bf16 %v458, %v455
      %v474 = vpack.c.bf16 %v459, %v456
      %v475 = vpack.c.bf16 %v460, %v460
      %v476 = vpack.c.bf16 %v461, %v461
      %v477 = vpack.c.bf16 %v462, %v462
      %vm478 = vcmask 588800
      %v480 = vsel %vm478, %v256, 0
      %vm482 = vcmask 1043456
      %v484 = vsel %vm482, %v475, 0
      %v487 = vsel %vm482, %v476, 0
      %v490 = vsel %vm482, %v477, 0
      %492 = vmatprep.subr.bf16.mxu0 0
      %493 = vmatpush1.bf16.msra.mxu0 0
      %494 = vmatprep.subr.bf16.mxu0 0
      %495 = vmatpush1.bf16.msra.mxu0 0
      %496 = vmatprep.subr.bf16.mxu0 0
      %497 = vmatpush1.bf16.msra.mxu0 0
      %498 = vmatprep.subr.bf16.mxu0 %v487
      %499 = vmatpush1.bf16.msra.mxu0 %v484
      %500 = vmatprep.subr.bf16.mxu0 %v473
      %501 = vmatpush1.bf16.msra.mxu0 %v472
      %502 = vmatprep.subr.bf16.mxu0 %v470
      %503 = vmatpush1.bf16.msra.mxu0 %v469
      %504 = vmatprep.subr.bf16.mxu0 %v467
      %505 = vmatpush1.bf16.msra.mxu0 %v466
      %506 = vmatprep.subr.bf16.mxu0 %v464
      %507 = vmatpush1.bf16.msra.mxu0 %v463
      %508 = vmatprep.subr.bf16.mxu0 0
      %509 = vmatpush2.bf16.msra.mxu0 0
      %510 = vmatprep.subr.bf16.mxu0 0
      %511 = vmatpush2.bf16.msra.mxu0 0
      %512 = vmatprep.subr.bf16.mxu0 0
      %513 = vmatpush2.bf16.msra.mxu0 0
      %514 = vmatprep.subr.bf16.mxu0 0
      %515 = vmatpush2.bf16.msra.mxu0 0
      %516 = vmatprep.subr.bf16.mxu0 0
      %517 = vmatpush2.bf16.msra.mxu0 0
      %518 = vmatprep.subr.bf16.mxu0 0
      %519 = vmatpush2.bf16.msra.mxu0 0
      %520 = vmatprep.subr.bf16.mxu0 0
      %521 = vmatpush2.bf16.msra.mxu0 0
      %522 = vmatprep.subr.bf16.mxu0 0
      %523 = vmatpush2.bf16.msra.mxu0 0
      %524 = vmatprep.mubr.bf16.mxu0 0
      %525 = vmatmul.mubr.bf16.gmra.mxu0 %v480
      %v526 = vpop.f32.mrf.mxu0
      %v527 = vadd.f32 0.0, %v526
      %v528 = vpop.f32.mrf.mxu0
      %v529 = vadd.f32 0.0, %v528
      %v530 = vpop.f32.mrf.mxu0
      %v531 = vpop.f32.mrf.mxu0
      %532 = vdwg.mxu0
      %533 = vmatprep.subr.bf16.mxu0 0
      %534 = vmatpush1.bf16.msra.mxu0 0
      %535 = vmatprep.subr.bf16.mxu0 0
      %536 = vmatpush1.bf16.msra.mxu0 0
      %537 = vmatprep.subr.bf16.mxu0 0
      %538 = vmatpush1.bf16.msra.mxu0 0
      %539 = vmatprep.subr.bf16.mxu0 0
      %540 = vmatpush1.bf16.msra.mxu0 %v490
      %541 = vmatprep.subr.bf16.mxu0 0
      %542 = vmatpush1.bf16.msra.mxu0 %v474
      %543 = vmatprep.subr.bf16.mxu0 0
      %544 = vmatpush1.bf16.msra.mxu0 %v471
      %545 = vmatprep.subr.bf16.mxu0 0
      %546 = vmatpush1.bf16.msra.mxu0 %v468
      %547 = vmatprep.subr.bf16.mxu0 0
      %548 = vmatpush1.bf16.msra.mxu0 %v465
      %549 = vmatprep.subr.bf16.mxu0 0
      %550 = vmatpush2.bf16.msra.mxu0 0
      %551 = vmatprep.subr.bf16.mxu0 0
      %552 = vmatpush2.bf16.msra.mxu0 0
      %553 = vmatprep.subr.bf16.mxu0 0
      %554 = vmatpush2.bf16.msra.mxu0 0
      %555 = vmatprep.subr.bf16.mxu0 0
      %556 = vmatpush2.bf16.msra.mxu0 0
      %557 = vmatprep.subr.bf16.mxu0 0
      %558 = vmatpush2.bf16.msra.mxu0 0
      %559 = vmatprep.subr.bf16.mxu0 0
      %560 = vmatpush2.bf16.msra.mxu0 0
      %561 = vmatprep.subr.bf16.mxu0 0
      %562 = vmatpush2.bf16.msra.mxu0 0
      %563 = vmatprep.subr.bf16.mxu0 0
      %564 = vmatpush2.bf16.msra.mxu0 0
      %565 = vmatprep.mubr.bf16.mxu0 0
      %566 = vmatmul.mubr.bf16.gmra.mxu0 %v480
      %v567 = vpop.f32.mrf.mxu0
      %v568 = vadd.f32 0.0, %v567
      %v569 = vpop.f32.mrf.mxu0
      %v570 = vpop.f32.mrf.mxu0
      %v571 = vpop.f32.mrf.mxu0
      %572 = vdwg.mxu0
      %574 = vset.pattern.permute.xlu0 0
      %575 = vperm.xlu0 %574, %v257
      %v576 = vpop.permute.xlu0 %575
      %v578 = vadd.f32 %v527, %v576
      %v579 = vadd.f32 %v529, %v576
      %v580 = vadd.f32 %v568, %v576
      %v581 = vsel %vm253, 1, 0
      %v582 = vsel %vm254, 1, 0
      %v583 = vsel %vm255, 1, 0
      %vm584 = vcmp.eq.s32.totalorder %v581, 1
      %vm585 = vcmp.eq.s32.totalorder %v582, 1
      %vm586 = vcmp.eq.s32.totalorder %v583, 1
      %v587 = vsel %vm584, %v578, 0.0
      %v588 = vsel %vm585, %v579, 0.0
      %v589 = vsel %vm586, %v580, 0.0
      %v590 = vpack.c.bf16 %v587, %v587
      %v591 = vpack.c.bf16 %v588, %v588
      %v592 = vpack.c.bf16 %v589, %v589
      %v596 = vunpack.c.l.b16 %v590
      %v597 = vunpack.c.l.b16 %v591
      %v598 = vunpack.c.l.b16 %v592
      %v599 = vpack.c.b16 %v597, %v596
      %v600 = vpack.c.b16 %v598, %v598
      %601 = vrot.lane.b32.xlu0 %v599, 19
      %v602 = vpop.permute.xlu0 %601
      %603 = vrot.lane.b32.xlu0 %v600, 19
      %v604 = vpop.permute.xlu0 %603
      %v605 = vrot.slane %v602, 4
      %vm606 = vcmask 154624
      %v607 = vsel %vm606, %v605, %v602
      %v608 = vsel %vm606, %v605, %v604
      %vm611 = vcmask 1043608
      %vm612 = vcmask 1047556
      %vm613 = vmor %vm612, %vm611
      %614 = vst.msk [vmem:[#allocation2] sm:$0xff] %vm613, %v607
      %vm615 = vcmask 396288
      %616 = vst.msk [vmem:[#allocation2 + $0x8] sm:$0xf] %vm615, %v608
      %s617 = scalar_lea.vmem %s1, 4
      %v618 = vld [vmem:[%s617] sm:$0xf]
      %s619 = scalar_lea.vmem %s2, 8
      %v620 = vld [vmem:[%s619] sm:$0xff]
      %v621 = vld [vmem:[#allocation2] sm:$0xff]
      %v622 = vld [vmem:[#allocation2 + $0x8] sm:$0xf]
      %v623 = vunpack.c.l.bf16 %v621
      %v624 = vunpack.c.h.bf16 %v621
      %v625 = vunpack.c.l.bf16 %v622
      %626 = vst [vmem:[#allocation3] sm:$0xff] %v623
      %627 = vst [vmem:[#allocation3 + $0x8] sm:$0xff] %v624
      %vm628 = vcmask 244736
      %629 = vst.msk [vmem:[#allocation3 + $0x10] sm:$0xff] %vm628, %v625
      %v630 = vld [vmem:[#allocation2] sm:$0xff]
      %v631 = vld [vmem:[#allocation2 + $0x8] sm:$0xf]
      %v632 = vunpack.c.l.bf16 %v630
      %v633 = vunpack.c.h.bf16 %v630
      %v634 = vunpack.c.l.bf16 %v631
      %638 = vrot.lane.b32.xlu0 %v632, 127
      %v639 = vpop.permute.xlu0 %638
      %640 = vrot.lane.b32.xlu0 %v633, 127
      %v641 = vpop.permute.xlu0 %640
      %642 = vrot.lane.b32.xlu0 %v634, 127
      %v643 = vpop.permute.xlu0 %642
      %v644 = vsel %vm280, %v639, %v641
      %v645 = vsel %vm280, %v641, %v643
      %649 = vst [vmem:[#allocation3 + $0x18] sm:$0xff] %v644
      %650 = vst [vmem:[#allocation3 + $0x20] sm:$0xff] %v645
      %651 = vst.msk [vmem:[#allocation3 + $0x28] sm:$0xff] %vm628, %v643
      %v652 = vld [vmem:[#allocation2] sm:$0xff]
      %v653 = vld [vmem:[#allocation2 + $0x8] sm:$0xf]
      %v654 = vunpack.c.l.bf16 %v652
      %v655 = vunpack.c.h.bf16 %v652
      %v656 = vunpack.c.l.bf16 %v653
      %660 = vrot.lane.b32.xlu0 %v654, 126
      %v661 = vpop.permute.xlu0 %660
      %662 = vrot.lane.b32.xlu0 %v655, 126
      %v663 = vpop.permute.xlu0 %662
      %664 = vrot.lane.b32.xlu0 %v656, 126
      %v665 = vpop.permute.xlu0 %664
      %v666 = vsel %vm301, %v661, %v663
      %v667 = vsel %vm301, %v663, %v665
      %671 = vst [vmem:[#allocation3 + $0x30] sm:$0xff] %v666
      %672 = vst [vmem:[#allocation3 + $0x38] sm:$0xff] %v667
      %673 = vst.msk [vmem:[#allocation3 + $0x40] sm:$0xff] %vm628, %v665
      %v674 = vld [vmem:[#allocation2] sm:$0xff]
      %v675 = vld [vmem:[#allocation2 + $0x8] sm:$0xf]
      %v676 = vunpack.c.l.bf16 %v674
      %v677 = vunpack.c.h.bf16 %v674
      %v678 = vunpack.c.l.bf16 %v675
      %682 = vrot.lane.b32.xlu0 %v676, 110
      %v683 = vpop.permute.xlu0 %682
      %684 = vrot.lane.b32.xlu0 %v677, 110
      %v685 = vpop.permute.xlu0 %684
      %686 = vrot.lane.b32.xlu0 %v678, 110
      %v687 = vpop.permute.xlu0 %686
      %v688 = vsel %vm322, %v683, %v685
      %v689 = vsel %vm322, %v685, %v687
      %693 = vst [vmem:[#allocation3 + $0x48] sm:$0xff] %v688
      %694 = vst [vmem:[#allocation3 + $0x50] sm:$0xff] %v689
      %695 = vst.msk [vmem:[#allocation3 + $0x58] sm:$0xff] %vm628, %v687
      %v696 = vld [vmem:[#allocation2] sm:$0xff]
      %v697 = vld [vmem:[#allocation2 + $0x8] sm:$0xf]
      %v698 = vunpack.c.l.bf16 %v696
      %v699 = vunpack.c.h.bf16 %v696
      %v700 = vunpack.c.l.bf16 %v697
      %704 = vrot.lane.b32.xlu0 %v698, 109
      %v705 = vpop.permute.xlu0 %704
      %706 = vrot.lane.b32.xlu0 %v699, 109
      %v707 = vpop.permute.xlu0 %706
      %708 = vrot.lane.b32.xlu0 %v700, 109
      %v709 = vpop.permute.xlu0 %708
      %v710 = vsel %vm343, %v705, %v707
      %v711 = vsel %vm343, %v707, %v709
      %715 = vst [vmem:[#allocation3 + $0x60] sm:$0xff] %v710
      %716 = vst [vmem:[#allocation3 + $0x68] sm:$0xff] %v711
      %717 = vst.msk [vmem:[#allocation3 + $0x70] sm:$0xff] %vm628, %v709
      %v718 = vld [vmem:[#allocation2] sm:$0xff]
      %v719 = vld [vmem:[#allocation2 + $0x8] sm:$0xf]
      %v720 = vunpack.c.l.bf16 %v718
      %v721 = vunpack.c.h.bf16 %v718
      %v722 = vunpack.c.l.bf16 %v719
      %726 = vrot.lane.b32.xlu0 %v720, 108
      %v727 = vpop.permute.xlu0 %726
      %728 = vrot.lane.b32.xlu0 %v721, 108
      %v729 = vpop.permute.xlu0 %728
      %730 = vrot.lane.b32.xlu0 %v722, 108
      %v731 = vpop.permute.xlu0 %730
      %v732 = vsel %vm364, %v727, %v729
      %v733 = vsel %vm364, %v729, %v731
      %737 = vst [vmem:[#allocation3 + $0x78] sm:$0xff] %v732
      %738 = vst [vmem:[#allocation3 + $0x80] sm:$0xff] %v733
      %739 = vst.msk [vmem:[#allocation3 + $0x88] sm:$0xff] %vm628, %v731
      %v740 = vld [vmem:[#allocation2] sm:$0xff]
      %v741 = vld [vmem:[#allocation2 + $0x8] sm:$0xf]
      %v742 = vunpack.c.l.bf16 %v740
      %v743 = vunpack.c.h.bf16 %v740
      %v744 = vunpack.c.l.bf16 %v741
      %748 = vrot.lane.b32.xlu0 %v742, 92
      %v749 = vpop.permute.xlu0 %748
      %750 = vrot.lane.b32.xlu0 %v743, 92
      %v751 = vpop.permute.xlu0 %750
      %752 = vrot.lane.b32.xlu0 %v744, 92
      %v753 = vpop.permute.xlu0 %752
      %v754 = vsel %vm385, %v749, %v751
      %v755 = vsel %vm385, %v751, %v753
      %759 = vst [vmem:[#allocation3 + $0x90] sm:$0xff] %v754
      %760 = vst [vmem:[#allocation3 + $0x98] sm:$0xff] %v755
      %761 = vst.msk [vmem:[#allocation3 + $0xa0] sm:$0xff] %vm628, %v753
      %v762 = vld [vmem:[#allocation2] sm:$0xff]
      %v763 = vld [vmem:[#allocation2 + $0x8] sm:$0xf]
      %v764 = vunpack.c.l.bf16 %v762
      %v765 = vunpack.c.h.bf16 %v762
      %v766 = vunpack.c.l.bf16 %v763
      %770 = vrot.lane.b32.xlu0 %v764, 91
      %v771 = vpop.permute.xlu0 %770
      %772 = vrot.lane.b32.xlu0 %v765, 91
      %v773 = vpop.permute.xlu0 %772
      %774 = vrot.lane.b32.xlu0 %v766, 91
      %v775 = vpop.permute.xlu0 %774
      %v776 = vsel %vm406, %v771, %v773
      %v777 = vsel %vm406, %v773, %v775
      %781 = vst [vmem:[#allocation3 + $0xa8] sm:$0xff] %v776
      %782 = vst [vmem:[#allocation3 + $0xb0] sm:$0xff] %v777
      %783 = vst.msk [vmem:[#allocation3 + $0xb8] sm:$0xff] %vm628, %v775
      %v784 = vld [vmem:[#allocation2] sm:$0xff]
      %v785 = vld [vmem:[#allocation2 + $0x8] sm:$0xf]
      %v786 = vunpack.c.l.bf16 %v784
      %v787 = vunpack.c.h.bf16 %v784
      %v788 = vunpack.c.l.bf16 %v785
      %792 = vrot.lane.b32.xlu0 %v786, 90
      %v793 = vpop.permute.xlu0 %792
      %794 = vrot.lane.b32.xlu0 %v787, 90
      %v795 = vpop.permute.xlu0 %794
      %796 = vrot.lane.b32.xlu0 %v788, 90
      %v797 = vpop.permute.xlu0 %796
      %v798 = vsel %vm427, %v793, %v795
      %v799 = vsel %vm427, %v795, %v797
      %803 = vst [vmem:[#allocation3 + $0xc0] sm:$0xff] %v798
      %804 = vst [vmem:[#allocation3 + $0xc8] sm:$0xff] %v799
      %805 = vst.msk [vmem:[#allocation3 + $0xd0] sm:$0xff] %vm628, %v797
      %v806 = vld [vmem:[#allocation3] sm:$0xff]
      %v807 = vld [vmem:[#allocation3 + $0x8] sm:$0xff]
      %v808 = vld [vmem:[#allocation3 + $0x10] sm:$0xff]
      %v809 = vld [vmem:[#allocation3 + $0x18] sm:$0xff]
      %v810 = vld [vmem:[#allocation3 + $0x20] sm:$0xff]
      %v811 = vld [vmem:[#allocation3 + $0x28] sm:$0xff]
      %v812 = vld [vmem:[#allocation3 + $0x30] sm:$0xff]
      %v813 = vld [vmem:[#allocation3 + $0x38] sm:$0xff]
      %v814 = vld [vmem:[#allocation3 + $0x40] sm:$0xff]
      %v815 = vld [vmem:[#allocation3 + $0x48] sm:$0xff]
      %v816 = vld [vmem:[#allocation3 + $0x50] sm:$0xff]
      %v817 = vld [vmem:[#allocation3 + $0x58] sm:$0xff]
      %v818 = vld [vmem:[#allocation3 + $0x60] sm:$0xff]
      %v819 = vld [vmem:[#allocation3 + $0x68] sm:$0xff]
      %v820 = vld [vmem:[#allocation3 + $0x70] sm:$0xff]
      %v821 = vld [vmem:[#allocation3 + $0x78] sm:$0xff]
      %v822 = vld [vmem:[#allocation3 + $0x80] sm:$0xff]
      %v823 = vld [vmem:[#allocation3 + $0x88] sm:$0xff]
      %v824 = vld [vmem:[#allocation3 + $0x90] sm:$0xff]
      %v825 = vld [vmem:[#allocation3 + $0x98] sm:$0xff]
      %v826 = vld [vmem:[#allocation3 + $0xa0] sm:$0xff]
      %v827 = vld [vmem:[#allocation3 + $0xa8] sm:$0xff]
      %v828 = vld [vmem:[#allocation3 + $0xb0] sm:$0xff]
      %v829 = vld [vmem:[#allocation3 + $0xb8] sm:$0xff]
      %v830 = vld [vmem:[#allocation3 + $0xc0] sm:$0xff]
      %v831 = vld [vmem:[#allocation3 + $0xc8] sm:$0xff]
      %v832 = vld [vmem:[#allocation3 + $0xd0] sm:$0xff]
      %v833 = vpack.c.bf16 %v809, %v806
      %v834 = vpack.c.bf16 %v810, %v807
      %v835 = vpack.c.bf16 %v811, %v808
      %v836 = vpack.c.bf16 %v815, %v812
      %v837 = vpack.c.bf16 %v816, %v813
      %v838 = vpack.c.bf16 %v817, %v814
      %v839 = vpack.c.bf16 %v821, %v818
      %v840 = vpack.c.bf16 %v822, %v819
      %v841 = vpack.c.bf16 %v823, %v820
      %v842 = vpack.c.bf16 %v827, %v824
      %v843 = vpack.c.bf16 %v828, %v825
      %v844 = vpack.c.bf16 %v829, %v826
      %v845 = vpack.c.bf16 %v830, %v830
      %v846 = vpack.c.bf16 %v831, %v831
      %v847 = vpack.c.bf16 %v832, %v832
      %v849 = vsel %vm478, %v618, 0
      %v852 = vsel %vm482, %v845, 0
      %v855 = vsel %vm482, %v846, 0
      %v858 = vsel %vm482, %v847, 0
      %860 = vmatprep.subr.bf16.mxu0 0
      %861 = vmatpush1.bf16.msra.mxu0 0
      %862 = vmatprep.subr.bf16.mxu0 0
      %863 = vmatpush1.bf16.msra.mxu0 0
      %864 = vmatprep.subr.bf16.mxu0 0
      %865 = vmatpush1.bf16.msra.mxu0 0
      %866 = vmatprep.subr.bf16.mxu0 %v855
      %867 = vmatpush1.bf16.msra.mxu0 %v852
      %868 = vmatprep.subr.bf16.mxu0 %v843
      %869 = vmatpush1.bf16.msra.mxu0 %v842
      %870 = vmatprep.subr.bf16.mxu0 %v840
      %871 = vmatpush1.bf16.msra.mxu0 %v839
      %872 = vmatprep.subr.bf16.mxu0 %v837
      %873 = vmatpush1.bf16.msra.mxu0 %v836
      %874 = vmatprep.subr.bf16.mxu0 %v834
      %875 = vmatpush1.bf16.msra.mxu0 %v833
      %876 = vmatprep.subr.bf16.mxu0 0
      %877 = vmatpush2.bf16.msra.mxu0 0
      %878 = vmatprep.subr.bf16.mxu0 0
      %879 = vmatpush2.bf16.msra.mxu0 0
      %880 = vmatprep.subr.bf16.mxu0 0
      %881 = vmatpush2.bf16.msra.mxu0 0
      %882 = vmatprep.subr.bf16.mxu0 0
      %883 = vmatpush2.bf16.msra.mxu0 0
      %884 = vmatprep.subr.bf16.mxu0 0
      %885 = vmatpush2.bf16.msra.mxu0 0
      %886 = vmatprep.subr.bf16.mxu0 0
      %887 = vmatpush2.bf16.msra.mxu0 0
      %888 = vmatprep.subr.bf16.mxu0 0
      %889 = vmatpush2.bf16.msra.mxu0 0
      %890 = vmatprep.subr.bf16.mxu0 0
      %891 = vmatpush2.bf16.msra.mxu0 0
      %892 = vmatprep.mubr.bf16.mxu0 0
      %893 = vmatmul.mubr.bf16.gmra.mxu0 %v849
      %v894 = vpop.f32.mrf.mxu0
      %v895 = vadd.f32 0.0, %v894
      %v896 = vpop.f32.mrf.mxu0
      %v897 = vadd.f32 0.0, %v896
      %v898 = vpop.f32.mrf.mxu0
      %v899 = vpop.f32.mrf.mxu0
      %900 = vdwg.mxu0
      %901 = vmatprep.subr.bf16.mxu0 0
      %902 = vmatpush1.bf16.msra.mxu0 0
      %903 = vmatprep.subr.bf16.mxu0 0
      %904 = vmatpush1.bf16.msra.mxu0 0
      %905 = vmatprep.subr.bf16.mxu0 0
      %906 = vmatpush1.bf16.msra.mxu0 0
      %907 = vmatprep.subr.bf16.mxu0 0
      %908 = vmatpush1.bf16.msra.mxu0 %v858
      %909 = vmatprep.subr.bf16.mxu0 0
      %910 = vmatpush1.bf16.msra.mxu0 %v844
      %911 = vmatprep.subr.bf16.mxu0 0
      %912 = vmatpush1.bf16.msra.mxu0 %v841
      %913 = vmatprep.subr.bf16.mxu0 0
      %914 = vmatpush1.bf16.msra.mxu0 %v838
      %915 = vmatprep.subr.bf16.mxu0 0
      %916 = vmatpush1.bf16.msra.mxu0 %v835
      %917 = vmatprep.subr.bf16.mxu0 0
      %918 = vmatpush2.bf16.msra.mxu0 0
      %919 = vmatprep.subr.bf16.mxu0 0
      %920 = vmatpush2.bf16.msra.mxu0 0
      %921 = vmatprep.subr.bf16.mxu0 0
      %922 = vmatpush2.bf16.msra.mxu0 0
      %923 = vmatprep.subr.bf16.mxu0 0
      %924 = vmatpush2.bf16.msra.mxu0 0
      %925 = vmatprep.subr.bf16.mxu0 0
      %926 = vmatpush2.bf16.msra.mxu0 0
      %927 = vmatprep.subr.bf16.mxu0 0
      %928 = vmatpush2.bf16.msra.mxu0 0
      %929 = vmatprep.subr.bf16.mxu0 0
      %930 = vmatpush2.bf16.msra.mxu0 0
      %931 = vmatprep.subr.bf16.mxu0 0
      %932 = vmatpush2.bf16.msra.mxu0 0
      %933 = vmatprep.mubr.bf16.mxu0 0
      %934 = vmatmul.mubr.bf16.gmra.mxu0 %v849
      %v935 = vpop.f32.mrf.mxu0
      %v936 = vadd.f32 0.0, %v935
      %v937 = vpop.f32.mrf.mxu0
      %v938 = vpop.f32.mrf.mxu0
      %v939 = vpop.f32.mrf.mxu0
      %940 = vdwg.mxu0
      %942 = vset.pattern.permute.xlu0 0
      %943 = vperm.xlu0 %942, %v620
      %v944 = vpop.permute.xlu0 %943
      %v946 = vadd.f32 %v895, %v944
      %v947 = vadd.f32 %v897, %v944
      %v948 = vadd.f32 %v936, %v944
      %950 = vrot.lane.b32.xlu0 %v946, 126
      %v951 = vpop.permute.xlu0 %950
      %953 = vrot.lane.b32.xlu0 %v946, 124
      %v954 = vpop.permute.xlu0 %953
      %956 = vrot.lane.b32.xlu0 %v946, 122
      %v957 = vpop.permute.xlu0 %956
      %959 = vrot.lane.b32.xlu0 %v946, 120
      %v960 = vpop.permute.xlu0 %959
      %962 = vrot.lane.b32.xlu0 %v946, 118
      %v963 = vpop.permute.xlu0 %962
      %965 = vrot.lane.b32.xlu0 %v946, 116
      %v966 = vpop.permute.xlu0 %965
      %969 = vrot.lane.b32.xlu0 %v946, 114
      %v970 = vpop.permute.xlu0 %969
      %971 = vrot.lane.b32.xlu0 %v947, 114
      %v972 = vpop.permute.xlu0 %971
      %vm973 = vcmask 932864
      %v974 = vsel %vm973, %v970, %v972
      %976 = vrot.lane.b32.xlu0 %v947, 112
      %v977 = vpop.permute.xlu0 %976
      %979 = vrot.lane.b32.xlu0 %v947, 110
      %v980 = vpop.permute.xlu0 %979
      %982 = vrot.lane.b32.xlu0 %v947, 108
      %v983 = vpop.permute.xlu0 %982
      %985 = vrot.lane.b32.xlu0 %v947, 106
      %v986 = vpop.permute.xlu0 %985
      %988 = vrot.lane.b32.xlu0 %v947, 104
      %v989 = vpop.permute.xlu0 %988
      %991 = vrot.lane.b32.xlu0 %v947, 102
      %v992 = vpop.permute.xlu0 %991
      %995 = vrot.lane.b32.xlu0 %v947, 100
      %v996 = vpop.permute.xlu0 %995
      %997 = vrot.lane.b32.xlu0 %v948, 100
      %v998 = vpop.permute.xlu0 %997
      %vm999 = vcmask 818176
      %v1000 = vsel %vm999, %v996, %v998
      %1002 = vrot.lane.b32.xlu0 %v948, 98
      %v1003 = vpop.permute.xlu0 %1002
      %vm1005 = vcmask 130048
      %v1006 = vsel %vm1005, %v946, %v951
      %vm1007 = vcmask 261120
      %v1008 = vsel %vm1007, %v1006, %v954
      %vm1009 = vcmask 392192
      %v1010 = vsel %vm1009, %v1008, %v957
      %vm1011 = vcmask 523264
      %v1012 = vsel %vm1011, %v1010, %v960
      %vm1013 = vcmask 654336
      %v1014 = vsel %vm1013, %v1012, %v963
      %vm1015 = vcmask 785408
      %v1016 = vsel %vm1015, %v1014, %v966
      %vm1017 = vcmask 916480
      %v1018 = vsel %vm1017, %v1016, %v974
      %v1019 = vsel %vm1005, %v977, %v980
      %v1020 = vsel %vm1007, %v1019, %v983
      %v1021 = vsel %vm1009, %v1020, %v986
      %v1022 = vsel %vm1011, %v1021, %v989
      %v1023 = vsel %vm1013, %v1022, %v992
      %v1024 = vsel %vm1015, %v1023, %v1000
      %v1025 = vsel %vm1017, %v1024, %v1003
      %1026 = vst [vmem:[%s170] sm:$0xff] %v1018
      %1027 = vst [vmem:[%s170 + $0x8] sm:$0xff] %v1025
      %p1028 = scmp.lt.s32.totalorder %s14, 1
      %s1029 = scalar_select %p1028, %s14, 1
      %s1030 = smul.addr %s1029, 2
      %s1031 = smul.addr %s1030, 8
      %s1032 = scalar_lea.vmem %s3, %s1031
      // Predicated region
      $region33: #{fractal_network_forward.1} parent=31 // pred_check
        %p1033 = pneg %p100
      $region34: #{fractal_network_forward.1} parent=31 // pred_check_branch
        %1035 = sbr.rel (%p1033) target = $region36
      $region35: #{fractal_network_forward.1} parent=31 // pred_region
        _
      $region36: #{fractal_network_forward.1} parent=31 // pred_fallthru
        _
    $region32: #{fractal_network_forward.1} parent=5 // pred_fallthru
      _
    %p1036 = scmp.le.s32.totalorder 2, %s9
    // Predicated region
    $region37: #{fractal_network_forward.1} parent=5 // pred_check
      %p1037 = pneg %p1036
    $region38: #{fractal_network_forward.1} parent=5 // pred_check_branch
      %1039 = sbr.rel (%p1037) target = $region40
    $region39: #{fractal_network_forward.1} parent=5 // pred_region
      %s1040 = ssub.s32 %s9, 2
      // Predicated region
      $region41: #{fractal_network_forward.1} parent=39 // pred_check
        %p1041 = pneg %p106
      $region42: #{fractal_network_forward.1} parent=39 // pred_check_branch
        %1043 = sbr.rel (%p1041) target = $region44
      $region43: #{fractal_network_forward.1} parent=39 // pred_region
        %p1044 = scmp.lt.s32.totalorder %s15, 1
        %s1045 = scalar_select %p1044, %s15, 1
        %s1046 = smul.addr %s1045, 2
        %s1047 = smul.addr %s1046, 8
        %s1048 = scalar_lea.vmem %s3, %s1047
      $region44: #{fractal_network_forward.1} parent=39 // pred_fallthru
        _
    $region40: #{fractal_network_forward.1} parent=5 // pred_fallthru
      _
  $region6: #{fractal_network_forward.1} parent=0 // loop_footer
    %s13 = sadd.s32 1, %s9
  $region7: #{fractal_network_forward.1} parent=0 // loop_footer_branch
    %8 = sbr.rel target = $region3
  $region8: #{fractal_network_forward.1} parent=0 // loop_exit
    _

</llo_original>
